<compile_context>
chip_gen: v7x
topology: tpu7x:2x2x1
jax: 0.10.0
libtpu: 0.0.40
codegen_flags: <defaults>
</compile_context>

<pallas_src>
import jax
import jax.numpy as jnp
from jax.experimental import pallas as pl
from jax.experimental.pallas import tpu as pltpu


def unflatten_view(x: jax.Array, dims: int) -> jax.Array:
    """Zero-cost equivalent of Unflatten(dims).forward(x): metadata-only.

    This is the path production call sites should use.
    """
    b, c = x.shape
    return jnp.reshape(x, (b, c) + (1,) * dims)


def _dma_copy_kernel(x_hbm, o_hbm, sem):
    # Single HBM->HBM DMA of the whole [B, C] array: no grid, no VMEM staging,
    # no vld/vst body work.  Streams at HBM roofline regardless of C alignment.
    cp = pltpu.make_async_copy(x_hbm, o_hbm, sem)
    cp.start()
    cp.wait()


def unflatten(x: jax.Array, dims: int) -> jax.Array:
    """Pallas-backed equivalent of Unflatten(dims).forward(x), x: [B, C].

    Kept only for cases that explicitly need a kernel boundary / fusion
    anchor; otherwise prefer `unflatten_view` (free).
    """
    assert dims in (1, 2, 3), "dims must be 1, 2, or 3"
    assert x.ndim == 2, "expected input of shape [B, C]"
    b, c = x.shape

    y2d = pl.pallas_call(
        _dma_copy_kernel,
        out_shape=jax.ShapeDtypeStruct((b, c), x.dtype),
        in_specs=[pl.BlockSpec(memory_space=pl.ANY)],
        out_specs=pl.BlockSpec(memory_space=pl.ANY),
        scratch_shapes=[pltpu.SemaphoreType.DMA(())],
    )(x)

    # Rank expansion is free outside the kernel (metadata-only reshape).
    return jnp.reshape(y2d, (b, c) + (1,) * dims)


if __name__ == "__main__":
    key = jax.random.PRNGKey(0)
    B, C = 2, 4
    dims = 2  # Unflatten(dims=2): [B, C] -> [B, C, 1, 1]

    x = jax.random.normal(key, (B, C), dtype=jnp.float32)

    y = unflatten(x, dims)
    jax.block_until_ready(y)

    # Reference check: pure-JAX reshape (same semantics as torch .view).
    y_ref = x.reshape((B, C) + (1,) * dims)
    assert y.shape == (B, C, 1, 1), y.shape
    assert y.dtype == x.dtype
    assert jnp.array_equal(y, y_ref)

    # Also sanity-check the recommended zero-cost path.
    assert jnp.array_equal(unflatten_view(x, dims), y_ref)

    print("KERNEL_OK")
</pallas_src>

<mosaic_0001>
module attributes {stable_mosaic.version = 11 : i64} {
  func.func @_dma_copy_kernel(%arg0: memref<2x4xf32, #tpu.memory_space<any>>, %arg1: memref<2x4xf32, #tpu.memory_space<any>>, %arg2: memref<!tpu.dma_semaphore, #tpu.memory_space<semaphore_mem>>) attributes {dimension_semantics = [], scalar_prefetch = 0 : i64, scratch_operands = 1 : i64, tpu.core_type = #tpu.core_type<tc>} {
    tpu.enqueue_dma source(%arg0 : memref<2x4xf32, #tpu.memory_space<any>>) target(%arg1 : memref<2x4xf32, #tpu.memory_space<any>>) target_semaphore(%arg2 : memref<!tpu.dma_semaphore, #tpu.memory_space<semaphore_mem>>)
    tpu.wait_dma2 semaphore(%arg2 : memref<!tpu.dma_semaphore, #tpu.memory_space<semaphore_mem>>) src(%arg0 : memref<2x4xf32, #tpu.memory_space<any>>) dst(%arg1 : memref<2x4xf32, #tpu.memory_space<any>>)
    return
  }
}

</mosaic_0001>

<llo_original>
// kernel: tpu_custom_call.1
$region0: #{tpu_custom_call.1}
  #allocation0 [shape = 'u32[]', space=smem, size = 0x4, offset = 0x4, fixed_abs, tag = 'smem constant byte address 0x4 - core index']
  #allocation1 [shape = 'u32[144,128]{1,0:T(1,128)}', space=vmem, size = 0x12000, scoped, tag = 'internal scratch']
  #allocation2 [shape = 's32[1]{0}', space=sflag, size = 0x4, scoped, tag = 'scratch operand']
  #allocation3 [shape = 's32[]', space=sflag, size = 0x4, offset = 0, fixed_abs, tag = 'sflag constant byte address 0x0 - dummy sync flag']
  #allocation4 [shape = 'u32[0]{0}', space=smem, size = 0, offset = 0, fixed_abs, tag = 'smem constant byte address 0x0 - null']
  %s0 = inlined_call_operand.hbm [shape: f32[2,4], index: 0, kind: input, shape index: {}]
  %s1 = inlined_call_operand.hbm [shape: f32[2,4], index: 1, kind: output, shape index: {}]
  %s2 = sld [smem:[#allocation0]]
  $region2: #{tpu_custom_call.1} parent=0
    _
  %s4 = ssub.s32 1, %s2
  %s5 = scalar_select 0, %s4, %s2
  %s7 = sshll.u32 1, 14
  %s8 = sxor.u32 4294967295, %s7
  %s11 = sshll.u32 3, 24
  %s12 = sxor.u32 4294967295, %s11
  %s13 = sand.u32 0, %s12
  %s15 = sor.u32 %s13, 0
  %18 = dma.general %s0, 32, %s1, [#allocation2], [#allocation3], [#allocation4], %s15, 0
  %s19 = smul.u32 2, 1
  %s20 = sshll.u32 %s19, 4
  %21 = dma.done [#allocation2], %s20
  %22 = vsyncmov [#allocation2]
  %s23 = vpop.sfrf %22
  %p24 = scmp.eq.s32.totalorder %s23, 0
  %p25 = pneg %p24
  %27 = shalt.err (%p25)

</llo_original>
